<compile_context>
chip_gen: v7x
topology: tpu7x:2x2x1
jax: 0.10.0
libtpu: 0.0.40
codegen_flags: <defaults>
</compile_context>

<pallas_src>
import functools

import jax
import jax.numpy as jnp
from jax.experimental import pallas as pl
from jax.experimental.pallas import tpu as pltpu

LANE = 128


def _cdiv(a, b):
    return -(-a // b)


def _round_up(n, m):
    return _cdiv(n, m) * m


def _pad2(a, rows, cols):
    r, c = a.shape
    return jnp.pad(a, ((0, rows - r), (0, cols - c)))


def _pick_tile(batch, block_m, sublane, step_overhead_rows=1024):
    """Choose (tm, padded_batch).

    Balances wasted padded rows against per-grid-step pipeline overhead
    (~0.35us/step ~= ~1k rows of DMA for this layer stack) and prefers an even
    step count so v7x megacore ("parallel" grid axis) keeps both TCs busy.
    """
    min_rows = _round_up(batch, sublane)
    block_m = max(_round_up(block_m, sublane), sublane)

    cands = set()
    t = block_m
    while t >= sublane:
        cands.add(t)
        t //= 2
    # Near-exact tilings of the actual batch (avoid padding 520 -> 1024 etc.).
    for k in range(1, 9):
        cands.add(min(_round_up(_cdiv(min_rows, k), sublane), block_m))

    best = None
    for tm in sorted(cands, reverse=True):
        padded = _round_up(batch, tm)
        steps = padded // tm
        # Megacore effectively halves the step count when it is even.
        sched_steps = steps // 2 if steps % 2 == 0 else steps
        cost = sched_steps * step_overhead_rows + padded
        key = (cost, steps % 2, -tm)  # cost, then prefer even steps, then bigger tile
        if best is None or key < best[0]:
            best = (key, tm, padded)
    return best[1], best[2]


def prepare_params(w1, b1, w2, b2, w3, b3, compute_dtype=jnp.bfloat16):
    """One-time padding/cast of parameters to kernel layout (hoisted out of the
    hot per-call path).  Weights are (in_features, out_features); feature dims
    are zero-padded to 128 lanes.  Returns a tuple of padded arrays."""
    state_size, hidden = w1.shape
    action_size = w3.shape[1]
    hid_p = _round_up(max(hidden, LANE), LANE)
    out_p = _round_up(max(action_size, LANE), LANE)

    w1p = _pad2(w1, state_size, hid_p).astype(compute_dtype)
    w2p = _pad2(w2, hid_p, hid_p).astype(compute_dtype)
    w3p = _pad2(w3, hid_p, out_p).astype(compute_dtype)
    b1p = _pad2(b1, 1, hid_p).astype(jnp.float32)
    b2p = _pad2(b2, 1, hid_p).astype(jnp.float32)
    b3p = _pad2(b3, 1, out_p).astype(jnp.float32)
    return (w1p, b1p, w2p, b2p, w3p, b3p)


def mlp_kernel(x_ref, w1_ref, b1_ref, w2_ref, b2_ref, w3_ref, b3_ref, o_ref,
               *, compute_dtype):
    # MXU matmuls with f32 accumulation; bias-add + ReLU in f32 on the VPU.
    h1 = jnp.dot(x_ref[...], w1_ref[...],
                 preferred_element_type=jnp.float32) + b1_ref[...]
    h1 = jnp.maximum(h1, 0.0)
    h2 = jnp.dot(h1.astype(compute_dtype), w2_ref[...],
                 preferred_element_type=jnp.float32) + b2_ref[...]
    h2 = jnp.maximum(h2, 0.0)
    out = jnp.dot(h2.astype(compute_dtype), w3_ref[...],
                  preferred_element_type=jnp.float32) + b3_ref[...]
    o_ref[...] = out.astype(o_ref.dtype)


@functools.partial(
    jax.jit,
    static_argnames=("action_size", "block_m", "compute_dtype", "out_dtype",
                     "return_padded"))
def mlp_forward(x, params, action_size, *, block_m=2048,
                compute_dtype=jnp.bfloat16, out_dtype=None,
                return_padded=False):
    """Fused Pallas forward of Linear->ReLU->Linear->ReLU->Linear.

    `params` must come from `prepare_params` (already padded + cast).
    out_dtype defaults to bf16 on the bf16 compute path (halves the output HBM
    stream); set out_dtype=jnp.float32 to keep an f32 output.
    return_padded=True skips the post-kernel slice and returns the padded
    (padded_batch, 128) buffer (rows >= batch / cols >= action_size are junk).
    """
    w1p, b1p, w2p, b2p, w3p, b3p = params
    batch, state_size = x.shape
    assert w1p.shape[0] == state_size
    hid_p = w1p.shape[1]
    out_p = w3p.shape[1]

    if out_dtype is None:
        out_dtype = jnp.bfloat16 if jnp.dtype(compute_dtype) == jnp.dtype(
            jnp.bfloat16) else x.dtype

    # Batch tiling: multiples of the sublane pack (16 for bf16, 8 for f32),
    # sized to balance padding waste vs. grid-step overhead, even steps for v7x.
    sublane = 16 if jnp.dtype(compute_dtype).itemsize == 2 else 8
    tm, padded_batch = _pick_tile(batch, block_m, sublane)
    grid = (padded_batch // tm,)

    # Per-call input pad + cast only (weights were prepared once).
    xp = jnp.pad(x, ((0, padded_batch - batch), (0, 0))).astype(compute_dtype)

    # Weights/biases: full-extent blocks, constant index_map -> VMEM-resident.
    full = lambda a: pl.BlockSpec(a.shape, lambda i: (0,) * a.ndim)

    # Advisory cost estimate (real padded traffic) for XLA scheduling.
    c_sz = jnp.dtype(compute_dtype).itemsize
    o_sz = jnp.dtype(out_dtype).itemsize
    weight_bytes = (state_size * hid_p + hid_p * hid_p + hid_p * out_p) * c_sz \
        + (2 * hid_p + out_p) * 4
    cost = pl.CostEstimate(
        flops=2 * padded_batch * (state_size * hid_p + hid_p * hid_p
                                  + hid_p * out_p),
        transcendentals=0,
        bytes_accessed=padded_batch * state_size * c_sz
        + padded_batch * out_p * o_sz + weight_bytes)

    # Rough per-step VMEM footprint: double-buffered x/out tiles, resident
    # weights, f32 intermediates.  Only raise the scoped limit if a very large
    # tile would bump v5e's 16 MiB default.
    vmem_est = (2 * tm * state_size * c_sz + 2 * tm * out_p * o_sz
                + weight_bytes + 2 * tm * hid_p * 4 + tm * out_p * 4)
    vmem_limit = int(min(2 * vmem_est, 96 << 20)) if vmem_est > (12 << 20) else None

    out_padded = pl.pallas_call(
        functools.partial(mlp_kernel, compute_dtype=compute_dtype),
        out_shape=jax.ShapeDtypeStruct((padded_batch, out_p), out_dtype),
        grid=grid,
        in_specs=[
            pl.BlockSpec((tm, state_size), lambda i: (i, 0)),  # x tile
            full(w1p), full(b1p),
            full(w2p), full(b2p),
            full(w3p), full(b3p),
        ],
        out_specs=pl.BlockSpec((tm, out_p), lambda i: (i, 0)),
        compiler_params=pltpu.CompilerParams(
            dimension_semantics=("parallel",),   # megacore on v7x, no-op elsewhere
            vmem_limit_bytes=vmem_limit),
        cost_estimate=cost,
    )(xp, w1p, b1p, w2p, b2p, w3p, b3p)

    if return_padded:
        return out_padded
    return out_padded[:batch, :action_size]


def init_params(key, state_size, action_size, hidden=64, dtype=jnp.float32):
    """Deterministic synthetic init (uniform, roughly matching PyTorch Linear scale)."""
    ks = jax.random.split(key, 6)

    def lin(kw, kb, fan_in, fan_out):
        bound = 1.0 / jnp.sqrt(fan_in)
        w = jax.random.uniform(kw, (fan_in, fan_out), dtype, -bound, bound)
        b = jax.random.uniform(kb, (1, fan_out), dtype, -bound, bound)
        return w, b

    w1, b1 = lin(ks[0], ks[1], state_size, hidden)
    w2, b2 = lin(ks[2], ks[3], hidden, hidden)
    w3, b3 = lin(ks[4], ks[5], hidden, action_size)
    return w1, b1, w2, b2, w3, b3


if __name__ == "__main__":
    # LunarLander-v2: state_size=8, action_size=4.
    state_size, action_size, batch = 8, 4, 2

    key = jax.random.PRNGKey(0)
    k_params, k_x, k_big = jax.random.split(key, 3)
    raw = init_params(k_params, state_size, action_size)
    w1, b1, w2, b2, w3, b3 = raw

    def ref_fwd(z):
        h = jnp.maximum(z @ w1 + b1, 0.0)
        h = jnp.maximum(h @ w2 + b2, 0.0)
        return h @ w3 + b3

    # Small-batch, exact-precision path (f32 matmuls + f32 output) -> tight check.
    params_f32 = prepare_params(*raw, compute_dtype=jnp.float32)
    x = jax.random.normal(k_x, (batch, state_size), jnp.float32)
    out_f32 = jax.block_until_ready(
        mlp_forward(x, params_f32, action_size, compute_dtype=jnp.float32))
    assert out_f32.shape == (batch, action_size)
    assert jnp.allclose(out_f32, ref_fwd(x), atol=1e-5, rtol=1e-5)

    # Batched production path: bf16 MXU operands + bf16 output, params prepared
    # once, adaptive tile (batch=1024 -> tm=512, grid=(2,) for v7x megacore).
    params_bf16 = prepare_params(*raw, compute_dtype=jnp.bfloat16)
    big_batch = 1024
    xb = jax.random.normal(k_big, (big_batch, state_size), jnp.float32)
    out_bf16 = jax.block_until_ready(mlp_forward(xb, params_bf16, action_size))
    assert out_bf16.shape == (big_batch, action_size)
    assert jnp.allclose(out_bf16.astype(jnp.float32), ref_fwd(xb),
                        atol=5e-2, rtol=5e-2)

    # Padded-output fast path (no post-kernel slice/copy).
    out_pad = jax.block_until_ready(
        mlp_forward(xb, params_bf16, action_size, return_padded=True))
    assert out_pad.shape[1] == 128
    assert jnp.allclose(out_pad[:big_batch, :action_size].astype(jnp.float32),
                        ref_fwd(xb), atol=5e-2, rtol=5e-2)

    print("KERNEL_OK")
</pallas_src>

<mosaic_0001>
module attributes {stable_mosaic.version = 11 : i64} {
  func.func @mlp_kernel(%arg0: i32, %arg1: memref<8x8xf32, #tpu.memory_space<vmem>>, %arg2: memref<8x128xf32, #tpu.memory_space<vmem>>, %arg3: memref<1x128xf32, #tpu.memory_space<vmem>>, %arg4: memref<128x128xf32, #tpu.memory_space<vmem>>, %arg5: memref<1x128xf32, #tpu.memory_space<vmem>>, %arg6: memref<128x128xf32, #tpu.memory_space<vmem>>, %arg7: memref<1x128xf32, #tpu.memory_space<vmem>>, %arg8: memref<8x128xf32, #tpu.memory_space<vmem>>) attributes {dimension_semantics = [#tpu.dimension_semantics<parallel>], iteration_bounds = array<i64: 1>, scalar_prefetch = 0 : i64, scratch_operands = 0 : i64, tpu.core_type = #tpu.core_type<tc>, window_params = [{transform_indices = @transform_0, window_bounds = array<i64: 8, 8>}, {pipeline_mode = #tpu.pipeline_mode<synchronous>, transform_indices = @transform_1, window_bounds = array<i64: 8, 128>}, {pipeline_mode = #tpu.pipeline_mode<synchronous>, transform_indices = @transform_2, window_bounds = array<i64: 1, 128>}, {pipeline_mode = #tpu.pipeline_mode<synchronous>, transform_indices = @transform_3, window_bounds = array<i64: 128, 128>}, {pipeline_mode = #tpu.pipeline_mode<synchronous>, transform_indices = @transform_4, window_bounds = array<i64: 1, 128>}, {pipeline_mode = #tpu.pipeline_mode<synchronous>, transform_indices = @transform_5, window_bounds = array<i64: 128, 128>}, {pipeline_mode = #tpu.pipeline_mode<synchronous>, transform_indices = @transform_6, window_bounds = array<i64: 1, 128>}, {transform_indices = @transform_7, window_bounds = array<i64: 8, 128>}]} {
    %c0 = arith.constant 0 : index
    %c0_0 = arith.constant 0 : index
    %0 = vector.load %arg1[%c0, %c0_0] : memref<8x8xf32, #tpu.memory_space<vmem>>, vector<8x8xf32>
    %c0_1 = arith.constant 0 : index
    %c0_2 = arith.constant 0 : index
    %1 = vector.load %arg2[%c0_1, %c0_2] : memref<8x128xf32, #tpu.memory_space<vmem>>, vector<8x128xf32>
    %cst = arith.constant dense<0.000000e+00> : vector<8x128xf32>
    %2 = tpu.matmul %0, %1, %cst {dimension_numbers = #tpu.dot_dimension_numbers<[1], [0], [0], [1], [0, 0, 1, 1], [], []>} : vector<8x8xf32>, vector<8x128xf32>, vector<8x128xf32> -> vector<8x128xf32>
    %c0_3 = arith.constant 0 : index
    %c0_4 = arith.constant 0 : index
    %3 = vector.load %arg3[%c0_3, %c0_4] : memref<1x128xf32, #tpu.memory_space<vmem>>, vector<1x128xf32>
    %4 = vector.broadcast %3 : vector<1x128xf32> to vector<8x128xf32>
    %5 = arith.addf %2, %4 : vector<8x128xf32>
    %cst_5 = arith.constant 0.000000e+00 : f32
    %6 = vector.broadcast %cst_5 : f32 to vector<8x128xf32>
    %7 = arith.maximumf %5, %6 : vector<8x128xf32>
    %c0_6 = arith.constant 0 : index
    %c0_7 = arith.constant 0 : index
    %8 = vector.load %arg4[%c0_6, %c0_7] : memref<128x128xf32, #tpu.memory_space<vmem>>, vector<128x128xf32>
    %cst_8 = arith.constant dense<0.000000e+00> : vector<8x128xf32>
    %9 = tpu.matmul %7, %8, %cst_8 {dimension_numbers = #tpu.dot_dimension_numbers<[1], [0], [0], [1], [0, 0, 1, 1], [], []>} : vector<8x128xf32>, vector<128x128xf32>, vector<8x128xf32> -> vector<8x128xf32>
    %c0_9 = arith.constant 0 : index
    %c0_10 = arith.constant 0 : index
    %10 = vector.load %arg5[%c0_9, %c0_10] : memref<1x128xf32, #tpu.memory_space<vmem>>, vector<1x128xf32>
    %11 = vector.broadcast %10 : vector<1x128xf32> to vector<8x128xf32>
    %12 = arith.addf %9, %11 : vector<8x128xf32>
    %cst_11 = arith.constant 0.000000e+00 : f32
    %13 = vector.broadcast %cst_11 : f32 to vector<8x128xf32>
    %14 = arith.maximumf %12, %13 : vector<8x128xf32>
    %c0_12 = arith.constant 0 : index
    %c0_13 = arith.constant 0 : index
    %15 = vector.load %arg6[%c0_12, %c0_13] : memref<128x128xf32, #tpu.memory_space<vmem>>, vector<128x128xf32>
    %cst_14 = arith.constant dense<0.000000e+00> : vector<8x128xf32>
    %16 = tpu.matmul %14, %15, %cst_14 {dimension_numbers = #tpu.dot_dimension_numbers<[1], [0], [0], [1], [0, 0, 1, 1], [], []>} : vector<8x128xf32>, vector<128x128xf32>, vector<8x128xf32> -> vector<8x128xf32>
    %c0_15 = arith.constant 0 : index
    %c0_16 = arith.constant 0 : index
    %17 = vector.load %arg7[%c0_15, %c0_16] : memref<1x128xf32, #tpu.memory_space<vmem>>, vector<1x128xf32>
    %18 = vector.broadcast %17 : vector<1x128xf32> to vector<8x128xf32>
    %19 = arith.addf %16, %18 : vector<8x128xf32>
    %c0_17 = arith.constant 0 : index
    %c0_18 = arith.constant 0 : index
    %20 = vector.load %arg8[%c0_17, %c0_18] : memref<8x128xf32, #tpu.memory_space<vmem>>, vector<8x128xf32>
    tpu.vector_store %arg8[%c0_17, %c0_18], %19 {strides = array<i32>} : memref<8x128xf32, #tpu.memory_space<vmem>>, vector<8x128xf32>,
    return
  }
  func.func @transform_0(%arg0: i32) -> (i32, i32) {
    %c0_i32 = arith.constant 0 : i32
    %c0_i32_0 = arith.constant 0 : i32
    return %arg0, %c0_i32 : i32, i32
  }
  func.func @transform_1(%arg0: i32) -> (i32, i32) {
    %c0_i32 = arith.constant 0 : i32
    %c0_i32_0 = arith.constant 0 : i32
    %c0_i32_1 = arith.constant 0 : i32
    return %c0_i32, %c0_i32_0 : i32, i32
  }
  func.func @transform_2(%arg0: i32) -> (i32, i32) {
    %c0_i32 = arith.constant 0 : i32
    %c0_i32_0 = arith.constant 0 : i32
    %c0_i32_1 = arith.constant 0 : i32
    return %c0_i32, %c0_i32_0 : i32, i32
  }
  func.func @transform_3(%arg0: i32) -> (i32, i32) {
    %c0_i32 = arith.constant 0 : i32
    %c0_i32_0 = arith.constant 0 : i32
    %c0_i32_1 = arith.constant 0 : i32
    return %c0_i32, %c0_i32_0 : i32, i32
  }
  func.func @transform_4(%arg0: i32) -> (i32, i32) {
    %c0_i32 = arith.constant 0 : i32
    %c0_i32_0 = arith.constant 0 : i32
    %c0_i32_1 = arith.constant 0 : i32
    return %c0_i32, %c0_i32_0 : i32, i32
  }
  func.func @transform_5(%arg0: i32) -> (i32, i32) {
    %c0_i32 = arith.constant 0 : i32
    %c0_i32_0 = arith.constant 0 : i32
    %c0_i32_1 = arith.constant 0 : i32
    return %c0_i32, %c0_i32_0 : i32, i32
  }
  func.func @transform_6(%arg0: i32) -> (i32, i32) {
    %c0_i32 = arith.constant 0 : i32
    %c0_i32_0 = arith.constant 0 : i32
    %c0_i32_1 = arith.constant 0 : i32
    return %c0_i32, %c0_i32_0 : i32, i32
  }
  func.func @transform_7(%arg0: i32) -> (i32, i32) {
    %c0_i32 = arith.constant 0 : i32
    %c0_i32_0 = arith.constant 0 : i32
    return %arg0, %c0_i32 : i32, i32
  }
}

</mosaic_0001>

<llo_original>
// kernel: mlp_forward.1
$region0: #{mlp_forward.1}
  #allocation0 [shape = 'u32[]', space=smem, size = 0x4, offset = 0x4, fixed_abs, tag = 'smem constant byte address 0x4 - core index']
  #allocation1 [shape = 'u32[144,128]{1,0:T(1,128)}', space=vmem, size = 0x12000, scoped, tag = 'internal scratch']
  %s0 = inlined_call_operand.vmem [shape: f32[8,8], index: 0, kind: input, shape index: {}]
  %s1 = inlined_call_operand.vmem [shape: f32[8,128], index: 1, kind: input, shape index: {}]
  %s2 = inlined_call_operand.vmem [shape: f32[1,128], index: 2, kind: input, shape index: {}]
  %s3 = inlined_call_operand.hbm [shape: f32[128,128], index: 3, kind: input, shape index: {}]
  %s4 = inlined_call_operand.vmem [shape: f32[1,128], index: 4, kind: input, shape index: {}]
  %s5 = inlined_call_operand.hbm [shape: f32[128,128], index: 5, kind: input, shape index: {}]
  %s6 = inlined_call_operand.vmem [shape: f32[1,128], index: 6, kind: input, shape index: {}]
  %s7 = inlined_call_operand.vmem [shape: f32[8,128], index: 7, kind: output, shape index: {}]
  %s8 = sld [smem:[#allocation0]]
  $region46: #{mlp_forward.1} parent=0
    _
  %s10 = ssub.s32 1, %s8
  %s11 = scalar_select 0, %s10, %s8
  $region1: #{mlp_forward.1} parent=0
    #allocation2 [shape = 'u8[65536]{0}', space=vmem, size = 0x10000, scoped, tag = 'input window, operand 3, single buffered']
    #allocation3 [shape = 's32[1]{0}', space=sflag, size = 0x4, scoped, tag = 'scoped memory for mlp_forward.1']
    #allocation4 [shape = 'u8[65536]{0}', space=vmem, size = 0x10000, scoped, tag = 'input window, operand 5, single buffered']
    #allocation5 [shape = 's32[1]{0}', space=sflag, size = 0x4, scoped, tag = 'scoped memory for mlp_forward.1']
    %12 = vsyncpa [#allocation3], 0
    %13 = vsyncpa [#allocation5], 0
    // Predicated region
    $region2: #{mlp_forward.1} parent=1 // pred_check
      _
    $region3: #{mlp_forward.1} parent=1 // pred_check_branch
      %15 = sbr.rel (0) target = $region5
    $region4: #{mlp_forward.1} parent=1 // pred_region
      _
    $region5: #{mlp_forward.1} parent=1 // pred_fallthru
      _
    // Predicated region
    $region6: #{mlp_forward.1} parent=1 // pred_check
      _
    $region7: #{mlp_forward.1} parent=1 // pred_check_branch
      %17 = sbr.rel (0) target = $region9
    $region8: #{mlp_forward.1} parent=1 // pred_region
      _
    $region9: #{mlp_forward.1} parent=1 // pred_fallthru
      _
    // Predicated region
    $region10: #{mlp_forward.1} parent=1 // pred_check
      _
    $region11: #{mlp_forward.1} parent=1 // pred_check_branch
      %19 = sbr.rel (0) target = $region13
    $region12: #{mlp_forward.1} parent=1 // pred_region
      _
    $region13: #{mlp_forward.1} parent=1 // pred_fallthru
      _
    // Predicated region
    $region14: #{mlp_forward.1} parent=1 // pred_check
      _
    $region15: #{mlp_forward.1} parent=1 // pred_check_branch
      %21 = sbr.rel (0) target = $region17
    $region16: #{mlp_forward.1} parent=1 // pred_region
      %s23 = ssub.s32 2048, 2048
      %24 = vsyncadd [#allocation3], %s23
      %s25 = sshll.u32 [#allocation2], 4
      %s26 = int_to_ptr.vmem [resolvable:$true] %s25
      %31 = dma.hbm_to_vmem [thread:$0]  %s3, 2048, %s26, [#allocation3], 128, 128, 8
    $region17: #{mlp_forward.1} parent=1 // pred_fallthru
      _
    // Predicated region
    $region18: #{mlp_forward.1} parent=1 // pred_check
      _
    $region19: #{mlp_forward.1} parent=1 // pred_check_branch
      %33 = sbr.rel (0) target = $region21
    $region20: #{mlp_forward.1} parent=1 // pred_region
      _
    $region21: #{mlp_forward.1} parent=1 // pred_fallthru
      _
    // Predicated region
    $region22: #{mlp_forward.1} parent=1 // pred_check
      _
    $region23: #{mlp_forward.1} parent=1 // pred_check_branch
      %35 = sbr.rel (0) target = $region25
    $region24: #{mlp_forward.1} parent=1 // pred_region
      %s37 = ssub.s32 2048, 2048
      %38 = vsyncadd [#allocation5], %s37
      %s39 = sshll.u32 [#allocation4], 4
      %s40 = int_to_ptr.vmem [resolvable:$true] %s39
      %45 = dma.hbm_to_vmem [thread:$0]  %s5, 2048, %s40, [#allocation5], 128, 128, 8
    $region25: #{mlp_forward.1} parent=1 // pred_fallthru
      _
    // Predicated region
    $region26: #{mlp_forward.1} parent=1 // pred_check
      _
    $region27: #{mlp_forward.1} parent=1 // pred_check_branch
      %47 = sbr.rel (0) target = $region29
    $region28: #{mlp_forward.1} parent=1 // pred_region
      _
    $region29: #{mlp_forward.1} parent=1 // pred_fallthru
      _
    // Predicated region
    $region30: #{mlp_forward.1} parent=1 // pred_check
      _
    $region31: #{mlp_forward.1} parent=1 // pred_check_branch
      %49 = sbr.rel (0) target = $region33
    $region32: #{mlp_forward.1} parent=1 // pred_region
      %50 = dma.done [#allocation3], 2048
    $region33: #{mlp_forward.1} parent=1 // pred_fallthru
      _
    // Predicated region
    $region34: #{mlp_forward.1} parent=1 // pred_check
      _
    $region35: #{mlp_forward.1} parent=1 // pred_check_branch
      %52 = sbr.rel (0) target = $region37
    $region36: #{mlp_forward.1} parent=1 // pred_region
      %53 = dma.done [#allocation5], 2048
    $region37: #{mlp_forward.1} parent=1 // pred_fallthru
      _
    %v54 = vld [vmem:[%s0] sm:$0xff]
    %v55 = vld [vmem:[%s1] sm:$0xff]
    %v56 = vld [vmem:[%s2] sm:$0x1]
    %v58 = vlaneseq
    %v59 = vshrl.u32 %v58, 7
    %v60 = vsub.s32 0, %v59
    %v61 = vrot.slane %v56, %v60
    %vm63 = vcmask 64512
    %v65 = vsel %vm63, %v54, 0
    %67 = vmatprep.subr.mxu0 0.0
    %68 = vmatpush1.msra.mxu0 %v55
    %69 = vmatprep.subr.mxu0 0.0
    %70 = vmatpush1.msra.mxu0 0.0
    %71 = vmatprep.subr.mxu0 0.0
    %72 = vmatpush1.msra.mxu0 0.0
    %73 = vmatprep.subr.mxu0 0.0
    %74 = vmatpush1.msra.mxu0 0.0
    %75 = vmatprep.subr.mxu0 0.0
    %76 = vmatpush1.msra.mxu0 0.0
    %77 = vmatprep.subr.mxu0 0.0
    %78 = vmatpush1.msra.mxu0 0.0
    %79 = vmatprep.subr.mxu0 0.0
    %80 = vmatpush1.msra.mxu0 0.0
    %81 = vmatprep.subr.mxu0 0.0
    %82 = vmatpush1.msra.mxu0 0.0
    %83 = vmatprep.subr.mxu0 0.0
    %84 = vmatpush1.msra.mxu0 0.0
    %85 = vmatprep.subr.mxu0 0.0
    %86 = vmatpush1.msra.mxu0 0.0
    %87 = vmatprep.subr.mxu0 0.0
    %88 = vmatpush1.msra.mxu0 0.0
    %89 = vmatprep.subr.mxu0 0.0
    %90 = vmatpush1.msra.mxu0 0.0
    %91 = vmatprep.subr.mxu0 0.0
    %92 = vmatpush1.msra.mxu0 0.0
    %93 = vmatprep.subr.mxu0 0.0
    %94 = vmatpush1.msra.mxu0 0.0
    %95 = vmatprep.subr.mxu0 0.0
    %96 = vmatpush1.msra.mxu0 0.0
    %97 = vmatprep.subr.mxu0 0.0
    %98 = vmatpush1.msra.mxu0 0.0
    %99 = vmatprep.subr.mxu0 0.0
    %100 = vmatpush1.msra.mxu0 0.0
    %101 = vmatprep.subr.mxu0 0.0
    %102 = vmatpush1.msra.mxu0 0.0
    %103 = vmatprep.subr.mxu0 0.0
    %104 = vmatpush1.msra.mxu0 0.0
    %105 = vmatprep.subr.mxu0 0.0
    %106 = vmatpush1.msra.mxu0 0.0
    %107 = vmatprep.subr.mxu0 0.0
    %108 = vmatpush1.msra.mxu0 0.0
    %109 = vmatprep.subr.mxu0 0.0
    %110 = vmatpush1.msra.mxu0 0.0
    %111 = vmatprep.subr.mxu0 0.0
    %112 = vmatpush1.msra.mxu0 0.0
    %113 = vmatprep.subr.mxu0 0.0
    %114 = vmatpush1.msra.mxu0 0.0
    %115 = vmatprep.subr.mxu0 0.0
    %116 = vmatpush1.msra.mxu0 0.0
    %117 = vmatprep.subr.mxu0 0.0
    %118 = vmatpush1.msra.mxu0 0.0
    %119 = vmatprep.subr.mxu0 0.0
    %120 = vmatpush1.msra.mxu0 0.0
    %121 = vmatprep.subr.mxu0 0.0
    %122 = vmatpush1.msra.mxu0 0.0
    %123 = vmatprep.subr.mxu0 0.0
    %124 = vmatpush1.msra.mxu0 0.0
    %125 = vmatprep.subr.mxu0 0.0
    %126 = vmatpush1.msra.mxu0 0.0
    %127 = vmatprep.subr.mxu0 0.0
    %128 = vmatpush1.msra.mxu0 0.0
    %129 = vmatprep.subr.mxu0 0.0
    %130 = vmatpush1.msra.mxu0 0.0
    %131 = vmatprep.mubr.f32.mxu0 0.0
    %132 = vmatmul.mubr.f32.gmra.mrb[0].mxu0 %v65
    %v133 = vpop.f32.mrb[0].mxu0
    %v134 = vadd.f32 %v61, %v133
    %v135 = vpop.f32.mrb[0].mxu0
    %136 = vdwg.mxu0
    %v137 = vmax.f32 %v134, 0.0
    %v138 = vld [vmem:[#allocation2] sm:$0xff]
    %v139 = vld [vmem:[#allocation2 + $0x8] sm:$0xff]
    %v140 = vld [vmem:[#allocation2 + $0x10] sm:$0xff]
    %v141 = vld [vmem:[#allocation2 + $0x18] sm:$0xff]
    %v142 = vld [vmem:[#allocation2 + $0x20] sm:$0xff]
    %v143 = vld [vmem:[#allocation2 + $0x28] sm:$0xff]
    %v144 = vld [vmem:[#allocation2 + $0x30] sm:$0xff]
    %v145 = vld [vmem:[#allocation2 + $0x38] sm:$0xff]
    %v146 = vld [vmem:[#allocation2 + $0x40] sm:$0xff]
    %v147 = vld [vmem:[#allocation2 + $0x48] sm:$0xff]
    %v148 = vld [vmem:[#allocation2 + $0x50] sm:$0xff]
    %v149 = vld [vmem:[#allocation2 + $0x58] sm:$0xff]
    %v150 = vld [vmem:[#allocation2 + $0x60] sm:$0xff]
    %v151 = vld [vmem:[#allocation2 + $0x68] sm:$0xff]
    %v152 = vld [vmem:[#allocation2 + $0x70] sm:$0xff]
    %v153 = vld [vmem:[#allocation2 + $0x78] sm:$0xff]
    %v154 = vld [vmem:[%s4] sm:$0x1]
    %v156 = vlaneseq
    %v157 = vshrl.u32 %v156, 7
    %v158 = vsub.s32 0, %v157
    %v159 = vrot.slane %v154, %v158
    %161 = vmatprep.subr.mxu0 0.0
    %162 = vmatpush1.msra.mxu0 %v138
    %163 = vmatprep.subr.mxu0 0.0
    %164 = vmatpush1.msra.mxu0 %v139
    %165 = vmatprep.subr.mxu0 0.0
    %166 = vmatpush1.msra.mxu0 %v140
    %167 = vmatprep.subr.mxu0 0.0
    %168 = vmatpush1.msra.mxu0 %v141
    %169 = vmatprep.subr.mxu0 0.0
    %170 = vmatpush1.msra.mxu0 %v142
    %171 = vmatprep.subr.mxu0 0.0
    %172 = vmatpush1.msra.mxu0 %v143
    %173 = vmatprep.subr.mxu0 0.0
    %174 = vmatpush1.msra.mxu0 %v144
    %175 = vmatprep.subr.mxu0 0.0
    %176 = vmatpush1.msra.mxu0 %v145
    %177 = vmatprep.subr.mxu0 0.0
    %178 = vmatpush1.msra.mxu0 %v146
    %179 = vmatprep.subr.mxu0 0.0
    %180 = vmatpush1.msra.mxu0 %v147
    %181 = vmatprep.subr.mxu0 0.0
    %182 = vmatpush1.msra.mxu0 %v148
    %183 = vmatprep.subr.mxu0 0.0
    %184 = vmatpush1.msra.mxu0 %v149
    %185 = vmatprep.subr.mxu0 0.0
    %186 = vmatpush1.msra.mxu0 %v150
    %187 = vmatprep.subr.mxu0 0.0
    %188 = vmatpush1.msra.mxu0 %v151
    %189 = vmatprep.subr.mxu0 0.0
    %190 = vmatpush1.msra.mxu0 %v152
    %191 = vmatprep.subr.mxu0 0.0
    %192 = vmatpush1.msra.mxu0 %v153
    %193 = vmatprep.subr.mxu0 0.0
    %194 = vmatpush1.msra.mxu0 0.0
    %195 = vmatprep.subr.mxu0 0.0
    %196 = vmatpush1.msra.mxu0 0.0
    %197 = vmatprep.subr.mxu0 0.0
    %198 = vmatpush1.msra.mxu0 0.0
    %199 = vmatprep.subr.mxu0 0.0
    %200 = vmatpush1.msra.mxu0 0.0
    %201 = vmatprep.subr.mxu0 0.0
    %202 = vmatpush1.msra.mxu0 0.0
    %203 = vmatprep.subr.mxu0 0.0
    %204 = vmatpush1.msra.mxu0 0.0
    %205 = vmatprep.subr.mxu0 0.0
    %206 = vmatpush1.msra.mxu0 0.0
    %207 = vmatprep.subr.mxu0 0.0
    %208 = vmatpush1.msra.mxu0 0.0
    %209 = vmatprep.subr.mxu0 0.0
    %210 = vmatpush1.msra.mxu0 0.0
    %211 = vmatprep.subr.mxu0 0.0
    %212 = vmatpush1.msra.mxu0 0.0
    %213 = vmatprep.subr.mxu0 0.0
    %214 = vmatpush1.msra.mxu0 0.0
    %215 = vmatprep.subr.mxu0 0.0
    %216 = vmatpush1.msra.mxu0 0.0
    %217 = vmatprep.subr.mxu0 0.0
    %218 = vmatpush1.msra.mxu0 0.0
    %219 = vmatprep.subr.mxu0 0.0
    %220 = vmatpush1.msra.mxu0 0.0
    %221 = vmatprep.subr.mxu0 0.0
    %222 = vmatpush1.msra.mxu0 0.0
    %223 = vmatprep.subr.mxu0 0.0
    %224 = vmatpush1.msra.mxu0 0.0
    %225 = vmatprep.mubr.f32.mxu0 0.0
    %226 = vmatmul.mubr.f32.gmra.mrb[0].mxu0 %v137
    %v227 = vpop.f32.mrb[0].mxu0
    %v228 = vadd.f32 %v159, %v227
    %v229 = vpop.f32.mrb[0].mxu0
    %230 = vdwg.mxu0
    %v231 = vmax.f32 %v228, 0.0
    %v232 = vld [vmem:[#allocation4] sm:$0xff]
    %v233 = vld [vmem:[#allocation4 + $0x8] sm:$0xff]
    %v234 = vld [vmem:[#allocation4 + $0x10] sm:$0xff]
    %v235 = vld [vmem:[#allocation4 + $0x18] sm:$0xff]
    %v236 = vld [vmem:[#allocation4 + $0x20] sm:$0xff]
    %v237 = vld [vmem:[#allocation4 + $0x28] sm:$0xff]
    %v238 = vld [vmem:[#allocation4 + $0x30] sm:$0xff]
    %v239 = vld [vmem:[#allocation4 + $0x38] sm:$0xff]
    %v240 = vld [vmem:[#allocation4 + $0x40] sm:$0xff]
    %v241 = vld [vmem:[#allocation4 + $0x48] sm:$0xff]
    %v242 = vld [vmem:[#allocation4 + $0x50] sm:$0xff]
    %v243 = vld [vmem:[#allocation4 + $0x58] sm:$0xff]
    %v244 = vld [vmem:[#allocation4 + $0x60] sm:$0xff]
    %v245 = vld [vmem:[#allocation4 + $0x68] sm:$0xff]
    %v246 = vld [vmem:[#allocation4 + $0x70] sm:$0xff]
    %v247 = vld [vmem:[#allocation4 + $0x78] sm:$0xff]
    %v248 = vld [vmem:[%s6] sm:$0x1]
    %v250 = vlaneseq
    %v251 = vshrl.u32 %v250, 7
    %v252 = vsub.s32 0, %v251
    %v253 = vrot.slane %v248, %v252
    %255 = vmatprep.subr.mxu0 0.0
    %256 = vmatpush1.msra.mxu0 %v232
    %257 = vmatprep.subr.mxu0 0.0
    %258 = vmatpush1.msra.mxu0 %v233
    %259 = vmatprep.subr.mxu0 0.0
    %260 = vmatpush1.msra.mxu0 %v234
    %261 = vmatprep.subr.mxu0 0.0
    %262 = vmatpush1.msra.mxu0 %v235
    %263 = vmatprep.subr.mxu0 0.0
    %264 = vmatpush1.msra.mxu0 %v236
    %265 = vmatprep.subr.mxu0 0.0
    %266 = vmatpush1.msra.mxu0 %v237
    %267 = vmatprep.subr.mxu0 0.0
    %268 = vmatpush1.msra.mxu0 %v238
    %269 = vmatprep.subr.mxu0 0.0
    %270 = vmatpush1.msra.mxu0 %v239
    %271 = vmatprep.subr.mxu0 0.0
    %272 = vmatpush1.msra.mxu0 %v240
    %273 = vmatprep.subr.mxu0 0.0
    %274 = vmatpush1.msra.mxu0 %v241
    %275 = vmatprep.subr.mxu0 0.0
    %276 = vmatpush1.msra.mxu0 %v242
    %277 = vmatprep.subr.mxu0 0.0
    %278 = vmatpush1.msra.mxu0 %v243
    %279 = vmatprep.subr.mxu0 0.0
    %280 = vmatpush1.msra.mxu0 %v244
    %281 = vmatprep.subr.mxu0 0.0
    %282 = vmatpush1.msra.mxu0 %v245
    %283 = vmatprep.subr.mxu0 0.0
    %284 = vmatpush1.msra.mxu0 %v246
    %285 = vmatprep.subr.mxu0 0.0
    %286 = vmatpush1.msra.mxu0 %v247
    %287 = vmatprep.subr.mxu0 0.0
    %288 = vmatpush1.msra.mxu0 0.0
    %289 = vmatprep.subr.mxu0 0.0
    %290 = vmatpush1.msra.mxu0 0.0
    %291 = vmatprep.subr.mxu0 0.0
    %292 = vmatpush1.msra.mxu0 0.0
    %293 = vmatprep.subr.mxu0 0.0
    %294 = vmatpush1.msra.mxu0 0.0
    %295 = vmatprep.subr.mxu0 0.0
    %296 = vmatpush1.msra.mxu0 0.0
    %297 = vmatprep.subr.mxu0 0.0
    %298 = vmatpush1.msra.mxu0 0.0
    %299 = vmatprep.subr.mxu0 0.0
    %300 = vmatpush1.msra.mxu0 0.0
    %301 = vmatprep.subr.mxu0 0.0
    %302 = vmatpush1.msra.mxu0 0.0
    %303 = vmatprep.subr.mxu0 0.0
    %304 = vmatpush1.msra.mxu0 0.0
    %305 = vmatprep.subr.mxu0 0.0
    %306 = vmatpush1.msra.mxu0 0.0
    %307 = vmatprep.subr.mxu0 0.0
    %308 = vmatpush1.msra.mxu0 0.0
    %309 = vmatprep.subr.mxu0 0.0
    %310 = vmatpush1.msra.mxu0 0.0
    %311 = vmatprep.subr.mxu0 0.0
    %312 = vmatpush1.msra.mxu0 0.0
    %313 = vmatprep.subr.mxu0 0.0
    %314 = vmatpush1.msra.mxu0 0.0
    %315 = vmatprep.subr.mxu0 0.0
    %316 = vmatpush1.msra.mxu0 0.0
    %317 = vmatprep.subr.mxu0 0.0
    %318 = vmatpush1.msra.mxu0 0.0
    %319 = vmatprep.mubr.f32.mxu0 0.0
    %320 = vmatmul.mubr.f32.gmra.mrb[0].mxu0 %v231
    %v321 = vpop.f32.mrb[0].mxu0
    %v322 = vadd.f32 %v253, %v321
    %v323 = vpop.f32.mrb[0].mxu0
    %324 = vdwg.mxu0
    %325 = vst [vmem:[%s7] sm:$0xff] %v322
    // Predicated region
    $region38: #{mlp_forward.1} parent=1 // pred_check
      _
    $region39: #{mlp_forward.1} parent=1 // pred_check_branch
      %327 = sbr.rel (0) target = $region41
    $region40: #{mlp_forward.1} parent=1 // pred_region
      _
    $region41: #{mlp_forward.1} parent=1 // pred_fallthru
      _
    // Predicated region
    $region42: #{mlp_forward.1} parent=1 // pred_check
      _
    $region43: #{mlp_forward.1} parent=1 // pred_check_branch
      %329 = sbr.rel (0) target = $region45
    $region44: #{mlp_forward.1} parent=1 // pred_region
      _
    $region45: #{mlp_forward.1} parent=1 // pred_fallthru
      _
    %330 = vsyncpa [#allocation3], 1
    %331 = vsyncpa [#allocation5], 1

</llo_original>
